<compile_context>
chip_gen: v6e
topology: v6e:2x2x1
jax: 0.10.0
libtpu: 0.0.40
codegen_flags: <defaults>
</compile_context>

<pallas_src>
import math
import functools

import jax
import jax.numpy as jnp
from jax import lax
from jax.experimental import pallas as pl
from jax.experimental.pallas import tpu as pltpu


MASK_VALUE = -1e30                      # large finite negative (avoids -inf/NaN pitfalls)


# ----------------------------------------------------------------------------
# Per-generation configuration.
# ----------------------------------------------------------------------------
def _tpu_vmem_capacity_bytes():
    """Physical per-core VMEM; conservative (v7x-sized) default if unavailable."""
    try:
        return int(pltpu.get_tpu_info().vmem_capacity_bytes)
    except Exception:
        return 64 * 1024 * 1024


def _gen_config():
    """Raise VMEM budget / projection tiles on v5e/v6e (128 MiB VMEM); shrink the
    attention kv tile and cap the budget on v7x (64 MiB)."""
    vmem = _tpu_vmem_capacity_bytes()
    big = vmem >= 128 * 1024 * 1024
    return {
        "vmem_limit": (min(vmem - 16 * 1024 * 1024, 112 * 1024 * 1024)
                       if big else 48 * 1024 * 1024),
        "lin_tm": 512 if big else 256,
        "lin_tn": 512 if big else 256,
        "lin_tk": 512,
        "attn_tq": 128,
        "attn_tk": 512 if big else 256,
    }


def _pick_tile(dim, target, align):
    """Largest tile <= target that divides `dim` and is a multiple of `align`.
    Falls back to the full dimension (always a legal block size)."""
    if dim <= target:
        return dim
    for t in range(target, align - 1, -align):
        if dim % t == 0:
            return t
    return dim


def _check_vmem_budget(estimate_bytes, limit_bytes, what):
    """Fail loudly if the tile fallback would blow the VMEM budget."""
    if estimate_bytes > limit_bytes:
        raise ValueError(
            f"{what}: estimated VMEM working set {estimate_bytes / 2**20:.1f} MiB "
            f"exceeds the {limit_bytes / 2**20:.1f} MiB budget; adjust tile "
            f"targets for this shape.")


# ----------------------------------------------------------------------------
# Tiled projection kernel: y = x @ wT, wT already (in_features, out_features).
# ----------------------------------------------------------------------------
def _linear_kernel(x_ref, w_ref, o_ref, acc_ref):
    @pl.when(pl.program_id(2) == 0)
    def _init():
        acc_ref[...] = jnp.zeros_like(acc_ref)

    # Weights are pre-transposed at param-prep time -> MXU-canonical contraction.
    acc_ref[...] += jnp.dot(x_ref[...], w_ref[...],
                            preferred_element_type=jnp.float32)

    @pl.when(pl.program_id(2) == pl.num_programs(2) - 1)
    def _store():
        o_ref[...] = acc_ref[...].astype(o_ref.dtype)


def pallas_linear(x, w_t):
    M, K = x.shape
    K2, N = w_t.shape
    assert K == K2
    cfg = _gen_config()
    itemsize = jnp.dtype(x.dtype).itemsize
    sub_align = 16 if itemsize == 2 else 8       # bf16 packs (16,128) per vreg
    tm = _pick_tile(M, cfg["lin_tm"], sub_align)
    tn = _pick_tile(N, cfg["lin_tn"], 128)
    tk = _pick_tile(K, cfg["lin_tk"], 128)
    est = (2 * (tm * tk + tk * tn) + 2 * tm * tn) * itemsize + tm * tn * 4
    _check_vmem_budget(est, cfg["vmem_limit"], "pallas_linear")

    grid = (M // tm, N // tn, K // tk)
    return pl.pallas_call(
        _linear_kernel,
        out_shape=jax.ShapeDtypeStruct((M, N), x.dtype),
        grid_spec=pltpu.PrefetchScalarGridSpec(
            num_scalar_prefetch=0,
            grid=grid,
            in_specs=[
                pl.BlockSpec((tm, tk), lambda i, j, k: (i, k)),
                pl.BlockSpec((tk, tn), lambda i, j, k: (k, j)),
            ],
            out_specs=pl.BlockSpec((tm, tn), lambda i, j, k: (i, j)),
            scratch_shapes=[pltpu.VMEM((tm, tn), jnp.float32)],
        ),
        compiler_params=pltpu.CompilerParams(
            dimension_semantics=("parallel", "parallel", "arbitrary"),
            vmem_limit_bytes=cfg["vmem_limit"]),
    )(x, w_t)


# ----------------------------------------------------------------------------
# Fused GQA flash-attention kernel.
# q: (B, N, E)  [already scaled via Wq],  kv: (B, N, 2*dkv) = [K | V] fused,
# out: (B, N, E) -- all lane-dense.  Grid: (batch, compact causal step).
# ----------------------------------------------------------------------------
def _gqa_flash_kernel(qi_tab_ref, ki_tab_ref, q_ref, kv_ref, o_ref,
                      q_sc, m_sc, l_sc, acc_sc,
                      *, num_q_heads, group_size):
    tq = q_ref.shape[1]
    tk = kv_ref.shape[1]
    emb = q_ref.shape[2]
    hkv = num_q_heads // group_size
    dq = emb // num_q_heads
    dkv = hkv * dq
    gq = group_size * tq                        # flattened (group, q) rows per kv head

    step = pl.program_id(1)
    qi = qi_tab_ref[step]
    ki = ki_tab_ref[step]
    q_start = qi * tq
    k_start = ki * tk
    last_ki = (q_start + tq - 1) // tk          # last kv tile this q tile needs

    @pl.when(ki == 0)
    def _init():
        # Hoisted per-q-tile work: build the head-major q layout once and reuse
        # it for every kv step (the 1/sqrt(dq) scale is already folded into Wq).
        q = q_ref[0].reshape(tq, hkv, group_size, dq)
        q_sc[...] = q.transpose(1, 2, 0, 3).reshape(hkv, gq, dq)
        # Finite init is safe: causality guarantees >=1 unmasked key per row in
        # kv tile 0 (would NOT hold for an arbitrary mask).
        m_sc[...] = jnp.full_like(m_sc, MASK_VALUE)
        l_sc[...] = jnp.zeros_like(l_sc)
        acc_sc[...] = jnp.zeros_like(acc_sc)

    def _online_softmax_update(mask):
        kv_tile = kv_ref[0]                               # (tk, 2*dkv)
        # Per-kv-head loop with lane slices of the fused kv tile: no head-major
        # K/V transpose, and the live f32 s/p intermediates are (gq, tk) per head
        # instead of (hkv, gq, tk).
        for h in range(hkv):
            kh = kv_tile[:, h * dq:(h + 1) * dq]          # (tk, dq)
            vh = kv_tile[:, dkv + h * dq:dkv + (h + 1) * dq]
            qh = q_sc[h]                                  # (gq, dq)
            s = lax.dot_general(qh, kh, (((1,), (1,)), ((), ())),
                                preferred_element_type=jnp.float32)   # (gq, tk)
            if mask is not None:
                s = jnp.where(mask, MASK_VALUE, s)
            m_prev = m_sc[h]
            m_new = jnp.maximum(m_prev, jnp.max(s, axis=-1, keepdims=True))
            alpha = jnp.exp(m_prev - m_new)
            # TODO(synk): on v6e/v7x a bf16 exp input would hit the 2x EUP path;
            # kept f32 for numerical parity with the PyTorch reference.
            p = jnp.exp(s - m_new)
            l_sc[h] = alpha * l_sc[h] + jnp.sum(p, axis=-1, keepdims=True)
            acc_sc[h] = alpha * acc_sc[h] + lax.dot_general(
                p.astype(vh.dtype), vh, (((1,), (0,)), ((), ())),
                preferred_element_type=jnp.float32)
            m_sc[h] = m_new

    # Build/apply the causal mask only for kv tiles that straddle the diagonal;
    # fully-below-diagonal steps skip the iota/compare/select entirely.
    needs_mask = (k_start + tk - 1) > q_start

    @pl.when(needs_mask)
    def _masked():
        r_idx = lax.broadcasted_iota(jnp.int32, (gq, tk), 0)
        c_idx = lax.broadcasted_iota(jnp.int32, (gq, tk), 1)
        # rows of the flattened (g, tq) block share seq position (r % tq)
        mask = (k_start + c_idx) > (q_start + (r_idx % tq))   # triu, diagonal=1
        _online_softmax_update(mask)

    @pl.when(jnp.logical_not(needs_mask))
    def _unmasked():
        _online_softmax_update(None)

    @pl.when(ki == last_ki)
    def _finalize():
        inv_l = pl.reciprocal(l_sc[...])              # exact (parity w/ reference)
        out = acc_sc[...] * inv_l                     # (hkv, gq, dq)
        # 'b g h n d -> b n (h g) d' == original q-head order; lane-dense store.
        out = out.reshape(hkv, group_size, tq, dq).transpose(2, 0, 1, 3)
        o_ref[0] = out.reshape(tq, emb).astype(o_ref.dtype)


def gqa_attention(q, kv, num_q_heads, group_size):
    B, N, E = q.shape
    dq = E // num_q_heads
    hkv = num_q_heads // group_size
    dkv = hkv * dq
    assert kv.shape == (B, N, 2 * dkv)

    cfg = _gen_config()
    itemsize = jnp.dtype(q.dtype).itemsize
    sub_align = 16 if itemsize == 2 else 8
    tq = _pick_tile(N, cfg["attn_tq"], sub_align)
    tk = _pick_tile(N, cfg["attn_tk"], 128)     # lane dim of the f32 score tiles
    n_q = N // tq
    gq = group_size * tq

    est = ((2 * (tq * E + tk * 2 * dkv) + 2 * tq * E) * itemsize
           + hkv * gq * dq * itemsize                      # hoisted q scratch
           + hkv * gq * (dq + 2) * 4                       # f32 acc + m + l
           + 3 * gq * tk * 4)                              # live f32 s/p/mask
    _check_vmem_budget(est, cfg["vmem_limit"], "gqa_attention")

    # Compact causal grid: enumerate only lower-triangular (qi, ki) tile pairs.
    qi_steps, ki_steps = [], []
    for qi in range(n_q):
        last_ki = (qi * tq + tq - 1) // tk
        for ki in range(last_ki + 1):
            qi_steps.append(qi)
            ki_steps.append(ki)
    qi_tab = jnp.asarray(qi_steps, dtype=jnp.int32)
    ki_tab = jnp.asarray(ki_steps, dtype=jnp.int32)
    n_steps = len(qi_steps)

    def q_map(b, s, qi_tab, ki_tab):            # scalar-prefetch refs positional
        return (b, qi_tab[s], 0)

    def kv_map(b, s, qi_tab, ki_tab):
        return (b, ki_tab[s], 0)

    kernel = functools.partial(_gqa_flash_kernel, num_q_heads=num_q_heads,
                               group_size=group_size)
    return pl.pallas_call(
        kernel,
        out_shape=jax.ShapeDtypeStruct((B, N, E), q.dtype),
        grid_spec=pltpu.PrefetchScalarGridSpec(
            num_scalar_prefetch=2,
            grid=(B, n_steps),
            in_specs=[
                pl.BlockSpec((1, tq, E), q_map),
                pl.BlockSpec((1, tk, 2 * dkv), kv_map),
            ],
            out_specs=pl.BlockSpec((1, tq, E), q_map),
            scratch_shapes=[
                pltpu.VMEM((hkv, gq, dq), q.dtype),       # hoisted head-major q
                pltpu.VMEM((hkv, gq, 1), jnp.float32),    # running max
                pltpu.VMEM((hkv, gq, 1), jnp.float32),    # running denom
                pltpu.VMEM((hkv, gq, dq), jnp.float32),   # output accumulator
            ],
        ),
        compiler_params=pltpu.CompilerParams(
            # batch axis "parallel" -> shards across v7x's 2 TensorCores.
            dimension_semantics=("parallel", "arbitrary"),
            vmem_limit_bytes=cfg["vmem_limit"]),
    )(qi_tab, ki_tab, q, kv)


# ----------------------------------------------------------------------------
# One-time parameter preparation + full forward.
# ----------------------------------------------------------------------------
def prepare_params(params, num_q_heads):
    """One-time prep (not per-forward): fold 1/sqrt(q_head_dim) into Wq, fuse
    Wk/Wv row-wise, pre-transpose all weights to (in, out)."""
    E = params["Wq"].shape[1]
    dq = E // num_q_heads
    scale = 1.0 / math.sqrt(dq)
    dtype = params["Wq"].dtype
    wq_scaled = (params["Wq"].astype(jnp.float32) * scale).astype(dtype)
    wkv = jnp.concatenate([params["Wk"], params["Wv"]], axis=0)
    return {"WqT": wq_scaled.T, "WkvT": wkv.T, "WoT": params["Wo"].T}


def gqa_forward(x, prep, num_q_heads, group_size):
    B, N, E = x.shape
    assert E % num_q_heads == 0 and num_q_heads % group_size == 0
    xf = x.reshape(B * N, E)

    q = pallas_linear(xf, prep["WqT"]).reshape(B, N, E)      # pre-scaled q
    kv = pallas_linear(xf, prep["WkvT"]).reshape(B, N, -1)   # fused [K | V]

    attn = gqa_attention(q, kv, num_q_heads, group_size)     # (B, N, E)

    return pallas_linear(attn.reshape(B * N, E), prep["WoT"]).reshape(B, N, E)


# ----------------------------------------------------------------------------
# Pure-JAX reference (mirrors the PyTorch forward) for validation.
# ----------------------------------------------------------------------------
def gqa_reference(x, params, num_q_heads, group_size):
    B, N, E = x.shape
    dq = E // num_q_heads
    num_kv_heads = num_q_heads // group_size
    Wq, Wk, Wv, Wo = params["Wq"], params["Wk"], params["Wv"], params["Wo"]

    q = x @ Wq.T
    k = x @ Wk.T
    v = x @ Wv.T
    q = q.reshape(B, N, num_q_heads, dq).transpose(0, 2, 1, 3)   # b h n d
    k = k.reshape(B, N, num_kv_heads, dq).transpose(0, 2, 1, 3)  # b h s d
    v = v.reshape(B, N, num_kv_heads, dq).transpose(0, 2, 1, 3)
    # 'b (h g) n d -> b g h n d'
    q = q.reshape(B, num_kv_heads, group_size, N, dq).transpose(0, 2, 1, 3, 4)
    attn = jnp.einsum("bghnd,bhsd->bghns", q, k) / math.sqrt(dq)
    mask = jnp.triu(jnp.ones((N, N), dtype=bool), k=1)
    attn = jnp.where(mask[None, None, None], -jnp.inf, attn)
    scores = jax.nn.softmax(attn, axis=-1)
    vals = jnp.einsum("bghns,bhsd->bghnd", scores, v)
    # 'b g h n d -> b n (h g) d' -> 'b n (h d)'
    vals = vals.transpose(0, 3, 2, 1, 4).reshape(B, N, E)
    return vals @ Wo.T


def init_params(key, embedding_dim, group_size):
    kv_head_dim = embedding_dim // group_size
    k1, k2, k3, k4 = jax.random.split(key, 4)
    bound = 1.0 / math.sqrt(embedding_dim)

    def u(k, shape):
        return jax.random.uniform(k, shape, jnp.float32, -bound, bound)

    return {
        "Wq": u(k1, (embedding_dim, embedding_dim)),
        "Wk": u(k2, (kv_head_dim, embedding_dim)),
        "Wv": u(k3, (kv_head_dim, embedding_dim)),
        "Wo": u(k4, (embedding_dim, embedding_dim)),
    }


if __name__ == "__main__":
    # Small, module-consistent shapes.
    batch_size = 2
    seq_len = 8
    embedding_dim = 32
    num_q_heads = 4
    group_size = 2           # -> num_kv_heads = 2, q_head_dim = 8, kv_head_dim = 16
    # dropout = 0.0, use_cache = False (deterministic forward path only)

    root = jax.random.PRNGKey(0)
    kx, kp = jax.random.split(root)
    x = jax.random.normal(kx, (batch_size, seq_len, embedding_dim), jnp.float32)
    params = init_params(kp, embedding_dim, group_size)

    # float32 model (PyTorch default dtype): check against the pure-JAX reference.
    prep = prepare_params(params, num_q_heads)
    y = jax.block_until_ready(gqa_forward(x, prep, num_q_heads, group_size))
    y_ref = gqa_reference(x, params, num_q_heads, group_size)
    assert y.shape == (batch_size, seq_len, embedding_dim)
    assert y.dtype == x.dtype
    assert jnp.allclose(y, y_ref, atol=1e-2, rtol=1e-2), "f32 Pallas output mismatch vs reference"

    # bfloat16 model: exercises the bf16 MXU operand path (f32 stats/accumulation).
    x16 = x.astype(jnp.bfloat16)
    p16 = {name: w.astype(jnp.bfloat16) for name, w in params.items()}
    prep16 = prepare_params(p16, num_q_heads)
    y16 = jax.block_until_ready(gqa_forward(x16, prep16, num_q_heads, group_size))
    assert y16.dtype == jnp.bfloat16
    y16_ref = gqa_reference(
        x16.astype(jnp.float32),
        {name: w.astype(jnp.float32) for name, w in p16.items()},
        num_q_heads, group_size)
    max_err = float(jnp.max(jnp.abs(y16.astype(jnp.float32) - y16_ref)))
    assert max_err < 0.1, f"bf16 Pallas output mismatch vs reference (max err {max_err})"

    print("KERNEL_OK")
</pallas_src>

<mosaic_0001>
module attributes {stable_mosaic.version = 11 : i64} {
  func.func @_linear_kernel(%arg0: i32, %arg1: i32, %arg2: i32, %arg3: memref<16x32xf32, #tpu.memory_space<vmem>>, %arg4: memref<32x32xf32, #tpu.memory_space<vmem>>, %arg5: memref<16x32xf32, #tpu.memory_space<vmem>>, %arg6: memref<16x32xf32, #tpu.memory_space<vmem>>) attributes {dimension_semantics = [#tpu.dimension_semantics<parallel>, #tpu.dimension_semantics<parallel>, #tpu.dimension_semantics<arbitrary>], iteration_bounds = array<i64: 1, 1, 1>, scalar_prefetch = 0 : i64, scratch_operands = 1 : i64, tpu.core_type = #tpu.core_type<tc>, window_params = [{transform_indices = @transform_0, window_bounds = array<i64: 16, 32>}, {transform_indices = @transform_1, window_bounds = array<i64: 32, 32>}, {transform_indices = @transform_2, window_bounds = array<i64: 16, 32>}]} {
    %c0_i32 = arith.constant 0 : i32
    %0 = arith.cmpi eq, %arg2, %c0_i32 : i32
    %1 = arith.extui %0 : i1 to i32
    %c0_i32_0 = arith.constant 0 : i32
    %2 = arith.cmpi ne, %1, %c0_i32_0 : i32
    scf.if %2 {
      %cst_10 = arith.constant 0.000000e+00 : f32
      %12 = vector.broadcast %cst_10 : f32 to vector<16x32xf32>
      %c0_11 = arith.constant 0 : index
      %c0_12 = arith.constant 0 : index
      %13 = vector.load %arg6[%c0_11, %c0_12] : memref<16x32xf32, #tpu.memory_space<vmem>>, vector<16x32xf32>
      tpu.vector_store %arg6[%c0_11, %c0_12], %12 {strides = array<i32>} : memref<16x32xf32, #tpu.memory_space<vmem>>, vector<16x32xf32>,
    } else {
    }
    %c0 = arith.constant 0 : index
    %c0_1 = arith.constant 0 : index
    %3 = vector.load %arg6[%c0, %c0_1] : memref<16x32xf32, #tpu.memory_space<vmem>>, vector<16x32xf32>
    %c0_2 = arith.constant 0 : index
    %c0_3 = arith.constant 0 : index
    %4 = vector.load %arg3[%c0_2, %c0_3] : memref<16x32xf32, #tpu.memory_space<vmem>>, vector<16x32xf32>
    %c0_4 = arith.constant 0 : index
    %c0_5 = arith.constant 0 : index
    %5 = vector.load %arg4[%c0_4, %c0_5] : memref<32x32xf32, #tpu.memory_space<vmem>>, vector<32x32xf32>
    %cst = arith.constant dense<0.000000e+00> : vector<16x32xf32>
    %6 = tpu.matmul %4, %5, %cst {dimension_numbers = #tpu.dot_dimension_numbers<[1], [0], [0], [1], [0, 0, 1, 1], [], []>} : vector<16x32xf32>, vector<32x32xf32>, vector<16x32xf32> -> vector<16x32xf32>
    %7 = arith.addf %3, %6 : vector<16x32xf32>
    %c0_6 = arith.constant 0 : index
    %c0_7 = arith.constant 0 : index
    %8 = vector.load %arg6[%c0_6, %c0_7] : memref<16x32xf32, #tpu.memory_space<vmem>>, vector<16x32xf32>
    tpu.vector_store %arg6[%c0_6, %c0_7], %7 {strides = array<i32>} : memref<16x32xf32, #tpu.memory_space<vmem>>, vector<16x32xf32>,
    %c0_i32_8 = arith.constant 0 : i32
    %9 = arith.cmpi eq, %arg2, %c0_i32_8 : i32
    %10 = arith.extui %9 : i1 to i32
    %c0_i32_9 = arith.constant 0 : i32
    %11 = arith.cmpi ne, %10, %c0_i32_9 : i32
    scf.if %11 {
      %c0_10 = arith.constant 0 : index
      %c0_11 = arith.constant 0 : index
      %12 = vector.load %arg6[%c0_10, %c0_11] : memref<16x32xf32, #tpu.memory_space<vmem>>, vector<16x32xf32>
      %c0_12 = arith.constant 0 : index
      %c0_13 = arith.constant 0 : index
      %13 = vector.load %arg5[%c0_12, %c0_13] : memref<16x32xf32, #tpu.memory_space<vmem>>, vector<16x32xf32>
      tpu.vector_store %arg5[%c0_12, %c0_13], %12 {strides = array<i32>} : memref<16x32xf32, #tpu.memory_space<vmem>>, vector<16x32xf32>,
    } else {
    }
    return
  }
  func.func @transform_0(%arg0: i32, %arg1: i32, %arg2: i32) -> (i32, i32) {
    %c0_i32 = arith.constant 0 : i32
    return %arg0, %arg2 : i32, i32
  }
  func.func @transform_1(%arg0: i32, %arg1: i32, %arg2: i32) -> (i32, i32) {
    %c0_i32 = arith.constant 0 : i32
    return %arg2, %arg1 : i32, i32
  }
  func.func @transform_2(%arg0: i32, %arg1: i32, %arg2: i32) -> (i32, i32) {
    %c0_i32 = arith.constant 0 : i32
    return %arg0, %arg1 : i32, i32
  }
}

</mosaic_0001>

<llo_original>
// kernel: tpu_custom_call.1
$region0: #{tpu_custom_call.1}
  #allocation0 [shape = 'u32[]', space=smem, size = 0x4, offset = 0x4, fixed_abs, tag = 'smem constant byte address 0x4 - core index']
  #allocation1 [shape = 'u32[144,128]{1,0:T(1,128)}', space=vmem, size = 0x12000, scoped, tag = 'internal scratch']
  #allocation2 [shape = 'f32[16,32]{1,0:T(8,128)}', space=vmem, size = 0x2000, scoped, tag = 'scratch operand']
  %s0 = inlined_call_operand.hbm [shape: f32[16,32], index: 0, kind: input, shape index: {}]
  %s1 = inlined_call_operand.hbm [shape: f32[32,32], index: 1, kind: input, shape index: {}]
  %s2 = inlined_call_operand.hbm [shape: f32[16,32], index: 2, kind: output, shape index: {}]
  %s3 = sld [smem:[#allocation0]]
  $region34: #{tpu_custom_call.1} parent=0
    _
  %s5 = ssub.s32 1, %s3
  %s6 = scalar_select 0, %s5, %s3
  $region1: #{tpu_custom_call.1} parent=0
    #allocation3 [shape = 'u8[8192]{0}', space=vmem, size = 0x2000, scoped, tag = 'input window, operand 0, single buffered']
    #allocation4 [shape = 's32[1]{0}', space=sflag, size = 0x4, scoped, tag = 'scoped memory for tpu_custom_call.1']
    #allocation5 [shape = 's32[1]{0}', space=sflag, size = 0x4, scoped, tag = 'scoped memory for tpu_custom_call.1']
    #allocation6 [shape = 'u8[16384]{0}', space=vmem, size = 0x4000, scoped, tag = 'input window, operand 1, single buffered']
    #allocation7 [shape = 's32[1]{0}', space=sflag, size = 0x4, scoped, tag = 'scoped memory for tpu_custom_call.1']
    #allocation8 [shape = 'u8[8192]{0}', space=vmem, size = 0x2000, scoped, tag = 'output window, operand 0, single buffered']
    %7 = vsyncpa [#allocation4], 0
    %8 = vsyncpa [#allocation7], 0
    %9 = vsyncpa [#allocation5], 0
    // Predicated region
    $region2: #{tpu_custom_call.1} parent=1 // pred_check
      _
    $region3: #{tpu_custom_call.1} parent=1 // pred_check_branch
      %11 = sbr.rel (0) target = $region5
    $region4: #{tpu_custom_call.1} parent=1 // pred_region
      %s13 = ssub.s32 256, 256
      %14 = vsyncadd [#allocation4], %s13
      %s15 = sshll.u32 [#allocation3], 4
      %s16 = int_to_ptr.vmem [resolvable:$true] %s15
      %21 = dma.hbm_to_vmem [thread:$0]  %s0, 256, %s16, [#allocation4], 128, 128, 8
    $region5: #{tpu_custom_call.1} parent=1 // pred_fallthru
      _
    // Predicated region
    $region6: #{tpu_custom_call.1} parent=1 // pred_check
      _
    $region7: #{tpu_custom_call.1} parent=1 // pred_check_branch
      %23 = sbr.rel (0) target = $region9
    $region8: #{tpu_custom_call.1} parent=1 // pred_region
      %s25 = ssub.s32 512, 512
      %26 = vsyncadd [#allocation7], %s25
      %s27 = sshll.u32 [#allocation6], 4
      %s28 = int_to_ptr.vmem [resolvable:$true] %s27
      %33 = dma.hbm_to_vmem [thread:$0]  %s1, 512, %s28, [#allocation7], 128, 128, 8
    $region9: #{tpu_custom_call.1} parent=1 // pred_fallthru
      _
    // Predicated region
    $region10: #{tpu_custom_call.1} parent=1 // pred_check
      _
    $region11: #{tpu_custom_call.1} parent=1 // pred_check_branch
      %35 = sbr.rel (0) target = $region13
    $region12: #{tpu_custom_call.1} parent=1 // pred_region
      %36 = dma.done [#allocation4], 256
    $region13: #{tpu_custom_call.1} parent=1 // pred_fallthru
      _
    // Predicated region
    $region14: #{tpu_custom_call.1} parent=1 // pred_check
      _
    $region15: #{tpu_custom_call.1} parent=1 // pred_check_branch
      %38 = sbr.rel (0) target = $region17
    $region16: #{tpu_custom_call.1} parent=1 // pred_region
      %39 = dma.done [#allocation7], 512
    $region17: #{tpu_custom_call.1} parent=1 // pred_fallthru
      _
    %p40 = scmp.eq.s32.totalorder 0, 0
    // Predicated region
    $region18: #{tpu_custom_call.1} parent=1 // pred_check
      %p41 = pneg %p40
    $region19: #{tpu_custom_call.1} parent=1 // pred_check_branch
      %43 = sbr.rel (%p41) target = $region21
    $region20: #{tpu_custom_call.1} parent=1 // pred_region
      %vm44 = vcmask 261120
      %45 = vst.msk [vmem:[#allocation2] sm:$0xff] %vm44, 0.0
      %46 = vst.msk [vmem:[#allocation2 + $0x8] sm:$0xff] %vm44, 0.0
    $region21: #{tpu_custom_call.1} parent=1 // pred_fallthru
      _
    %v47 = vld [vmem:[#allocation2] sm:$0xff]
    %v48 = vld [vmem:[#allocation2 + $0x8] sm:$0xff]
    %v49 = vld [vmem:[#allocation3] sm:$0xff]
    %v50 = vld [vmem:[#allocation3 + $0x8] sm:$0xff]
    %v51 = vld [vmem:[#allocation6] sm:$0xff]
    %v52 = vld [vmem:[#allocation6 + $0x8] sm:$0xff]
    %v53 = vld [vmem:[#allocation6 + $0x10] sm:$0xff]
    %v54 = vld [vmem:[#allocation6 + $0x18] sm:$0xff]
    %vm55 = vcmask 261120
    %v57 = vsel %vm55, %v49, 0
    %v60 = vsel %vm55, %v50, 0
    %62 = vmatprep.subr.mxu0 0.0
    %63 = vmatpush1.msra.mxu0 0.0
    %64 = vmatprep.subr.mxu0 0.0
    %65 = vmatpush1.msra.mxu0 0.0
    %66 = vmatprep.subr.mxu0 0.0
    %67 = vmatpush1.msra.mxu0 0.0
    %68 = vmatprep.subr.mxu0 0.0
    %69 = vmatpush1.msra.mxu0 0.0
    %70 = vmatprep.subr.mxu0 0.0
    %71 = vmatpush1.msra.mxu0 0.0
    %72 = vmatprep.subr.mxu0 0.0
    %73 = vmatpush1.msra.mxu0 0.0
    %74 = vmatprep.subr.mxu0 0.0
    %75 = vmatpush1.msra.mxu0 0.0
    %76 = vmatprep.subr.mxu0 0.0
    %77 = vmatpush1.msra.mxu0 0.0
    %78 = vmatprep.subr.mxu0 0.0
    %79 = vmatpush1.msra.mxu0 0.0
    %80 = vmatprep.subr.mxu0 0.0
    %81 = vmatpush1.msra.mxu0 0.0
    %82 = vmatprep.subr.mxu0 0.0
    %83 = vmatpush1.msra.mxu0 0.0
    %84 = vmatprep.subr.mxu0 0.0
    %85 = vmatpush1.msra.mxu0 0.0
    %86 = vmatprep.subr.mxu0 0.0
    %87 = vmatpush1.msra.mxu0 %v54
    %88 = vmatprep.subr.mxu0 0.0
    %89 = vmatpush1.msra.mxu0 %v53
    %90 = vmatprep.subr.mxu0 0.0
    %91 = vmatpush1.msra.mxu0 %v52
    %92 = vmatprep.subr.mxu0 0.0
    %93 = vmatpush1.msra.mxu0 %v51
    %94 = vmatprep.subr.mxu0 0.0
    %95 = vmatpush2.msra.mxu0 0.0
    %96 = vmatprep.subr.mxu0 0.0
    %97 = vmatpush2.msra.mxu0 0.0
    %98 = vmatprep.subr.mxu0 0.0
    %99 = vmatpush2.msra.mxu0 0.0
    %100 = vmatprep.subr.mxu0 0.0
    %101 = vmatpush2.msra.mxu0 0.0
    %102 = vmatprep.subr.mxu0 0.0
    %103 = vmatpush2.msra.mxu0 0.0
    %104 = vmatprep.subr.mxu0 0.0
    %105 = vmatpush2.msra.mxu0 0.0
    %106 = vmatprep.subr.mxu0 0.0
    %107 = vmatpush2.msra.mxu0 0.0
    %108 = vmatprep.subr.mxu0 0.0
    %109 = vmatpush2.msra.mxu0 0.0
    %110 = vmatprep.subr.mxu0 0.0
    %111 = vmatpush2.msra.mxu0 0.0
    %112 = vmatprep.subr.mxu0 0.0
    %113 = vmatpush2.msra.mxu0 0.0
    %114 = vmatprep.subr.mxu0 0.0
    %115 = vmatpush2.msra.mxu0 0.0
    %116 = vmatprep.subr.mxu0 0.0
    %117 = vmatpush2.msra.mxu0 0.0
    %118 = vmatprep.subr.mxu0 0.0
    %119 = vmatpush2.msra.mxu0 0.0
    %120 = vmatprep.subr.mxu0 0.0
    %121 = vmatpush2.msra.mxu0 0.0
    %122 = vmatprep.subr.mxu0 0.0
    %123 = vmatpush2.msra.mxu0 0.0
    %124 = vmatprep.subr.mxu0 0.0
    %125 = vmatpush2.msra.mxu0 0.0
    %126 = vmatprep.mubr.f32.mxu0 0.0
    %127 = vmatmul.mubr.f32.gmra.mxu0 %v57
    %v128 = vpop.f32.mrf.mxu0
    %v129 = vadd.f32 0.0, %v128
    %v130 = vpop.f32.mrf.mxu0
    %131 = vmatprep.mubr.f32.mxu0 0.0
    %132 = vmatmul.mubr.f32.gmra.mxu0 %v60
    %v133 = vpop.f32.mrf.mxu0
    %v134 = vadd.f32 0.0, %v133
    %v135 = vpop.f32.mrf.mxu0
    %136 = vdwg.mxu0
    %v137 = vadd.f32 %v47, %v129
    %v138 = vadd.f32 %v48, %v134
    %139 = vst.msk [vmem:[#allocation2] sm:$0xff] %vm55, %v137
    %140 = vst.msk [vmem:[#allocation2 + $0x8] sm:$0xff] %vm55, %v138
    // Predicated region
    $region22: #{tpu_custom_call.1} parent=1 // pred_check
      %p141 = pneg %p40
    $region23: #{tpu_custom_call.1} parent=1 // pred_check_branch
      %143 = sbr.rel (%p141) target = $region25
    $region24: #{tpu_custom_call.1} parent=1 // pred_region
      %v144 = vld [vmem:[#allocation2] sm:$0xff]
      %v145 = vld [vmem:[#allocation2 + $0x8] sm:$0xff]
      %146 = vst.msk [vmem:[#allocation8] sm:$0xff] %vm55, %v144
      %147 = vst.msk [vmem:[#allocation8 + $0x8] sm:$0xff] %vm55, %v145
    $region25: #{tpu_custom_call.1} parent=1 // pred_fallthru
      _
    // Predicated region
    $region26: #{tpu_custom_call.1} parent=1 // pred_check
      _
    $region27: #{tpu_custom_call.1} parent=1 // pred_check_branch
      %149 = sbr.rel (0) target = $region29
    $region28: #{tpu_custom_call.1} parent=1 // pred_region
      %s151 = ssub.s32 256, 256
      %152 = vsyncadd [#allocation5], %s151
      %s153 = sshll.u32 [#allocation8], 4
      %s154 = int_to_ptr.vmem [resolvable:$true] %s153
      %159 = dma.vmem_to_hbm [thread:$0]  %s154, 256, %s2, [#allocation5], 128, 128, 8
    $region29: #{tpu_custom_call.1} parent=1 // pred_fallthru
      _
    // Predicated region
    $region30: #{tpu_custom_call.1} parent=1 // pred_check
      _
    $region31: #{tpu_custom_call.1} parent=1 // pred_check_branch
      %161 = sbr.rel (0) target = $region33
    $region32: #{tpu_custom_call.1} parent=1 // pred_region
      %162 = dma.done [#allocation5], 256
    $region33: #{tpu_custom_call.1} parent=1 // pred_fallthru
      _
    %163 = vsyncpa [#allocation4], 1
    %164 = vsyncpa [#allocation7], 1
    %165 = vsyncpa [#allocation5], 1

</llo_original>
